<compile_context>
chip_gen: v7x
topology: tpu7x:2x2x1
jax: 0.10.0
libtpu: 0.0.40
codegen_flags: <defaults>
</compile_context>

<pallas_src>
import functools
import math

import numpy as np
import jax
import jax.numpy as jnp
from jax import lax
from jax.experimental import pallas as pl
from jax.experimental.pallas import tpu as pltpu


# ---------------------------------------------------------------------------
# Host-side (cached) DFT bases.
# ---------------------------------------------------------------------------
@functools.lru_cache(maxsize=32)
def _build_bases(t: int, low_freq: int):
    """Returns (basis_fwd (2Fp,T), basis_inv (T,2Fp), n_f, f_pad) or None."""
    n_rfft = t // 2 + 1
    hi = n_rfft - 1 if t % 2 == 0 else n_rfft          # drop Nyquist for even T
    n_f = hi - low_freq
    if n_f <= 0:
        return None
    f_pad = ((n_f + 7) // 8) * 8                       # sublane-aligned halves
    k = np.arange(low_freq, hi, dtype=np.int64)
    tau = np.arange(t, dtype=np.int64)
    # Reduce angle mod T in integers so the basis stays accurate for long T.
    theta = (2.0 * np.pi / t) * ((k[:, None] * tau[None, :]) % t).astype(np.float64)
    cos_m = np.zeros((f_pad, t), np.float64)
    sin_m = np.zeros((f_pad, t), np.float64)
    cos_m[:n_f] = np.cos(theta)
    sin_m[:n_f] = np.sin(theta)
    # forward real DFT:  [re; im] = [cos; -sin] @ x
    basis_fwd = np.concatenate([cos_m, -sin_m], axis=0).astype(np.float32)
    # conjugate-folded inverse at integer t: out = 2*[cos^T | -sin^T] @ [re; im]
    # (factor 2 on every retained bin matches the torch module, DC included)
    basis_inv = (2.0 * np.concatenate([cos_m.T, -sin_m.T], axis=1)).astype(np.float32)
    return basis_fwd, basis_inv, n_f, f_pad


# ---------------------------------------------------------------------------
# Fused kernel: DFT matmul -> in-kernel top-k mask -> masked inverse DFT matmul
# ---------------------------------------------------------------------------
def _make_kernel(top_k: int, f_pad: int, compute_dtype):
    def kernel(basis_fwd_ref, basis_inv_ref, x_ref, o_ref):
        x = x_ref[...].astype(compute_dtype)
        # forward DFT on the MXU: coef = [re; im]  (2Fp, d_tile), f32 accumulate
        coef = jnp.dot(basis_fwd_ref[...], x, preferred_element_type=jnp.float32)
        re = coef[:f_pad, :]
        im = coef[f_pad:, :]
        mag = re * re + im * im                       # rank on |X|^2 (no sqrt)
        row = lax.broadcasted_iota(jnp.int32, mag.shape, 0).astype(jnp.float32)
        mask = jnp.zeros(mag.shape, jnp.float32)
        rem = mag
        # K argmax / mask-out passes (K = factor*log(F) is tiny and static).
        # Ties resolve to the lowest index, matching lax.top_k / torch.topk.
        for _ in range(top_k):
            colmax = jnp.max(rem, axis=0, keepdims=True)
            cand = jnp.where(rem == colmax, row, float(f_pad))
            sel = row == jnp.min(cand, axis=0, keepdims=True)
            mask = jnp.where(sel, 1.0, mask)
            rem = jnp.where(sel, -1.0, rem)
        masked = jnp.concatenate([re * mask, im * mask], axis=0).astype(compute_dtype)
        # masked inverse DFT on the MXU
        o_ref[...] = jnp.dot(basis_inv_ref[...], masked,
                             preferred_element_type=jnp.float32).astype(o_ref.dtype)

    return kernel


def _pick_d_tile(b: int, d: int, target: int = 512) -> int:
    if d % 128 != 0:
        # TODO(synk): pad D to a multiple of 128 in the wrapper instead of one
        # full-width block for awkward d_model values.
        return d
    d_tile = 128
    for cand in range(target, 127, -128):
        if d % cand == 0:
            d_tile = cand
            break
    # keep >= 2 parallel grid steps so v7x can shard across both TensorCores
    if b * (d // d_tile) < 2 and d_tile % 256 == 0:
        d_tile //= 2
    return d_tile


# ---------------------------------------------------------------------------
# Wrapper reproducing FourierLayer.forward
# ---------------------------------------------------------------------------
def fourier_layer(x, low_freq=1, factor=1, compute_dtype=jnp.float32):
    x = x.astype(jnp.float32)
    b, t, d = x.shape
    bases = _build_bases(t, low_freq)
    if bases is None:
        return jnp.zeros((b, t, d), jnp.float32)
    basis_fwd, basis_inv, n_f, f_pad = bases
    top_k = min(int(factor * math.log(n_f)), n_f)
    if top_k <= 0:
        # torch.topk(k=0) -> empty selection -> extrapolation sums to zero.
        return jnp.zeros((b, t, d), jnp.float32)

    d_tile = _pick_d_tile(b, d)
    grid = (b, d // d_tile)
    two_f = 2 * f_pad

    # Explicit scoped-VMEM budget from the per-step footprint (~2x headroom),
    # capped at 64 MiB so it is valid on v7x as well as v5e/v6e.
    itemsize = jnp.dtype(compute_dtype).itemsize
    footprint = (2 * two_f * t * itemsize          # both bases (grid-invariant)
                 + 4 * t * d_tile * 4              # x + out tiles, double-buffered
                 + 8 * two_f * d_tile * 4)         # coef / mag / mask intermediates
    vmem_limit = int(min(max(2 * footprint, 32 * 1024 * 1024), 64 * 1024 * 1024))

    # TODO(synk): for very large T*F the full (2Fp, T) basis no longer fits in
    # VMEM — add a reduction grid axis ("arbitrary") with a pl.when-initialized
    # f32 accumulator for that regime.
    kernel = _make_kernel(top_k, f_pad, compute_dtype)
    return pl.pallas_call(
        kernel,
        grid=grid,
        in_specs=[
            pl.BlockSpec((two_f, t), lambda i, j: (0, 0)),                     # basis_fwd
            pl.BlockSpec((t, two_f), lambda i, j: (0, 0)),                     # basis_inv
            pl.BlockSpec((pl.Squeezed(), t, d_tile), lambda i, j: (i, 0, j)),  # x (B,T,D)
        ],
        out_specs=pl.BlockSpec((pl.Squeezed(), t, d_tile), lambda i, j: (i, 0, j)),
        out_shape=jax.ShapeDtypeStruct((b, t, d), jnp.float32),
        compiler_params=pltpu.CompilerParams(
            dimension_semantics=("parallel", "parallel"),
            vmem_limit_bytes=vmem_limit,
        ),
    )(jnp.asarray(basis_fwd, compute_dtype), jnp.asarray(basis_inv, compute_dtype), x)


# ---------------------------------------------------------------------------
# Pure-JAX reference (mirrors the PyTorch forward exactly)
# ---------------------------------------------------------------------------
def fourier_layer_ref(x, low_freq=1, factor=1):
    x = x.astype(jnp.float32)
    b, t, d = x.shape
    xf = jnp.fft.rfft(x, axis=1)
    if t % 2 == 0:
        xf = xf[:, low_freq:-1]
        f = jnp.fft.rfftfreq(t)[low_freq:-1].astype(jnp.float32)
    else:
        xf = xf[:, low_freq:]
        f = jnp.fft.rfftfreq(t)[low_freq:].astype(jnp.float32)
    length = xf.shape[1]
    top_k = int(factor * math.log(length))
    mag = jnp.abs(xf)
    _, idx = lax.top_k(jnp.transpose(mag, (0, 2, 1)), top_k)         # (b, d, k)
    xf_sel = jnp.transpose(
        jnp.take_along_axis(jnp.transpose(xf, (0, 2, 1)), idx, axis=2), (0, 2, 1))
    f_sel = jnp.transpose(f[idx], (0, 2, 1))                          # (b, k, d)
    xf_all = jnp.concatenate([xf_sel, jnp.conj(xf_sel)], axis=1)
    f_all = jnp.concatenate([f_sel, -f_sel], axis=1)
    tau = jnp.arange(t, dtype=jnp.float32)
    amp = jnp.abs(xf_all)[:, :, None, :]
    phase = jnp.angle(xf_all)[:, :, None, :]
    ang = 2.0 * math.pi * f_all[:, :, None, :] * tau[None, None, :, None] + phase
    return jnp.sum(amp * jnp.cos(ang), axis=1)


if __name__ == "__main__":
    B, T, D = 2, 16, 128        # d_model = 128
    LOW_FREQ, FACTOR = 1, 2

    key = jax.random.PRNGKey(0)
    x = jax.random.normal(key, (B, T, D), dtype=jnp.float32)

    out = jax.block_until_ready(fourier_layer(x, low_freq=LOW_FREQ, factor=FACTOR))

    ref = fourier_layer_ref(x, low_freq=LOW_FREQ, factor=FACTOR)
    max_err = float(jnp.max(jnp.abs(out - ref)))
    assert out.shape == (B, T, D) and out.dtype == jnp.float32
    assert max_err < 1e-2, f"max abs error {max_err}"
    print("KERNEL_OK")
</pallas_src>

<mosaic_0001>
module attributes {stable_mosaic.version = 11 : i64} {
  func.func @kernel(%arg0: i32, %arg1: i32, %arg2: memref<16x16xf32, #tpu.memory_space<vmem>>, %arg3: memref<16x16xf32, #tpu.memory_space<vmem>>, %arg4: memref<1x16x128xf32, #tpu.memory_space<vmem>>, %arg5: memref<1x16x128xf32, #tpu.memory_space<vmem>>) attributes {dimension_semantics = [#tpu.dimension_semantics<parallel>, #tpu.dimension_semantics<parallel>], iteration_bounds = array<i64: 2, 1>, scalar_prefetch = 0 : i64, scratch_operands = 0 : i64, tpu.core_type = #tpu.core_type<tc>, window_params = [{pipeline_mode = #tpu.pipeline_mode<synchronous>, transform_indices = @transform_0, window_bounds = array<i64: 16, 16>}, {pipeline_mode = #tpu.pipeline_mode<synchronous>, transform_indices = @transform_1, window_bounds = array<i64: 16, 16>}, {transform_indices = @transform_2, window_bounds = array<i64: 1, 16, 128>}, {transform_indices = @transform_3, window_bounds = array<i64: 1, 16, 128>}]} {
    %c0 = arith.constant 0 : index
    %c0_0 = arith.constant 0 : index
    %c0_1 = arith.constant 0 : index
    %0 = vector.load %arg4[%c0, %c0_0, %c0_1] : memref<1x16x128xf32, #tpu.memory_space<vmem>>, vector<1x16x128xf32>
    %1 = vector.shape_cast %0 : vector<1x16x128xf32> to vector<16x128xf32>
    %c0_2 = arith.constant 0 : index
    %c0_3 = arith.constant 0 : index
    %2 = vector.load %arg2[%c0_2, %c0_3] : memref<16x16xf32, #tpu.memory_space<vmem>>, vector<16x16xf32>
    %cst = arith.constant dense<0.000000e+00> : vector<16x128xf32>
    %3 = tpu.matmul %2, %1, %cst {dimension_numbers = #tpu.dot_dimension_numbers<[1], [0], [0], [1], [0, 0, 1, 1], [], []>} : vector<16x16xf32>, vector<16x128xf32>, vector<16x128xf32> -> vector<16x128xf32>
    %4 = vector.extract_strided_slice %3 {offsets = [0, 0], sizes = [8, 128], strides = [1, 1]} : vector<16x128xf32> to vector<8x128xf32>
    %5 = vector.extract_strided_slice %3 {offsets = [8, 0], sizes = [8, 128], strides = [1, 1]} : vector<16x128xf32> to vector<8x128xf32>
    %6 = arith.mulf %4, %4 : vector<8x128xf32>
    %7 = arith.mulf %5, %5 : vector<8x128xf32>
    %8 = arith.addf %6, %7 : vector<8x128xf32>
    %9 = tpu.iota {dimensions = array<i32: 0>} : vector<8x128xi32>
    %10 = arith.sitofp %9 : vector<8x128xi32> to vector<8x128xf32>
    %cst_4 = arith.constant 0.000000e+00 : f32
    %11 = vector.broadcast %cst_4 : f32 to vector<8x128xf32>
    %cst_5 = arith.constant dense<0xFF800000> : vector<128xf32>
    %12 = vector.multi_reduction <maximumf>, %8, %cst_5 [0] : vector<8x128xf32> to vector<128xf32>
    %13 = vector.shape_cast %12 : vector<128xf32> to vector<1x128xf32>
    %14 = vector.broadcast %13 : vector<1x128xf32> to vector<8x128xf32>
    %15 = arith.cmpf oeq, %8, %14 : vector<8x128xf32>
    %cst_6 = arith.constant 8.000000e+00 : f32
    %16 = vector.broadcast %cst_6 : f32 to vector<8x128xf32>
    %17 = arith.select %15, %10, %16 : vector<8x128xi1>, vector<8x128xf32>
    %cst_7 = arith.constant dense<0x7F800000> : vector<128xf32>
    %18 = vector.multi_reduction <minimumf>, %17, %cst_7 [0] : vector<8x128xf32> to vector<128xf32>
    %19 = vector.shape_cast %18 : vector<128xf32> to vector<1x128xf32>
    %20 = vector.broadcast %19 : vector<1x128xf32> to vector<8x128xf32>
    %21 = arith.cmpf oeq, %10, %20 : vector<8x128xf32>
    %cst_8 = arith.constant 1.000000e+00 : f32
    %22 = vector.broadcast %cst_8 : f32 to vector<8x128xf32>
    %23 = arith.select %21, %22, %11 : vector<8x128xi1>, vector<8x128xf32>
    %cst_9 = arith.constant -1.000000e+00 : f32
    %24 = vector.broadcast %cst_9 : f32 to vector<8x128xf32>
    %25 = arith.select %21, %24, %8 : vector<8x128xi1>, vector<8x128xf32>
    %cst_10 = arith.constant dense<0xFF800000> : vector<128xf32>
    %26 = vector.multi_reduction <maximumf>, %25, %cst_10 [0] : vector<8x128xf32> to vector<128xf32>
    %27 = vector.shape_cast %26 : vector<128xf32> to vector<1x128xf32>
    %28 = vector.broadcast %27 : vector<1x128xf32> to vector<8x128xf32>
    %29 = arith.cmpf oeq, %25, %28 : vector<8x128xf32>
    %cst_11 = arith.constant 8.000000e+00 : f32
    %30 = vector.broadcast %cst_11 : f32 to vector<8x128xf32>
    %31 = arith.select %29, %10, %30 : vector<8x128xi1>, vector<8x128xf32>
    %cst_12 = arith.constant dense<0x7F800000> : vector<128xf32>
    %32 = vector.multi_reduction <minimumf>, %31, %cst_12 [0] : vector<8x128xf32> to vector<128xf32>
    %33 = vector.shape_cast %32 : vector<128xf32> to vector<1x128xf32>
    %34 = vector.broadcast %33 : vector<1x128xf32> to vector<8x128xf32>
    %35 = arith.cmpf oeq, %10, %34 : vector<8x128xf32>
    %cst_13 = arith.constant 1.000000e+00 : f32
    %36 = vector.broadcast %cst_13 : f32 to vector<8x128xf32>
    %37 = arith.select %35, %36, %23 : vector<8x128xi1>, vector<8x128xf32>
    %cst_14 = arith.constant -1.000000e+00 : f32
    %38 = vector.broadcast %cst_14 : f32 to vector<8x128xf32>
    %39 = arith.select %35, %38, %25 : vector<8x128xi1>, vector<8x128xf32>
    %cst_15 = arith.constant dense<0xFF800000> : vector<128xf32>
    %40 = vector.multi_reduction <maximumf>, %39, %cst_15 [0] : vector<8x128xf32> to vector<128xf32>
    %41 = vector.shape_cast %40 : vector<128xf32> to vector<1x128xf32>
    %42 = vector.broadcast %41 : vector<1x128xf32> to vector<8x128xf32>
    %43 = arith.cmpf oeq, %39, %42 : vector<8x128xf32>
    %cst_16 = arith.constant 8.000000e+00 : f32
    %44 = vector.broadcast %cst_16 : f32 to vector<8x128xf32>
    %45 = arith.select %43, %10, %44 : vector<8x128xi1>, vector<8x128xf32>
    %cst_17 = arith.constant dense<0x7F800000> : vector<128xf32>
    %46 = vector.multi_reduction <minimumf>, %45, %cst_17 [0] : vector<8x128xf32> to vector<128xf32>
    %47 = vector.shape_cast %46 : vector<128xf32> to vector<1x128xf32>
    %48 = vector.broadcast %47 : vector<1x128xf32> to vector<8x128xf32>
    %49 = arith.cmpf oeq, %10, %48 : vector<8x128xf32>
    %cst_18 = arith.constant 1.000000e+00 : f32
    %50 = vector.broadcast %cst_18 : f32 to vector<8x128xf32>
    %51 = arith.select %49, %50, %37 : vector<8x128xi1>, vector<8x128xf32>
    %52 = arith.mulf %4, %51 : vector<8x128xf32>
    %53 = arith.mulf %5, %51 : vector<8x128xf32>
    %54 = tpu.concatenate %52, %53 in 0 : vector<8x128xf32>, vector<8x128xf32> -> vector<16x128xf32>
    %c0_19 = arith.constant 0 : index
    %c0_20 = arith.constant 0 : index
    %55 = vector.load %arg3[%c0_19, %c0_20] : memref<16x16xf32, #tpu.memory_space<vmem>>, vector<16x16xf32>
    %cst_21 = arith.constant dense<0.000000e+00> : vector<16x128xf32>
    %56 = tpu.matmul %55, %54, %cst_21 {dimension_numbers = #tpu.dot_dimension_numbers<[1], [0], [0], [1], [0, 0, 1, 1], [], []>} : vector<16x16xf32>, vector<16x128xf32>, vector<16x128xf32> -> vector<16x128xf32>
    %c0_22 = arith.constant 0 : index
    %c0_23 = arith.constant 0 : index
    %c0_24 = arith.constant 0 : index
    %57 = vector.load %arg5[%c0_22, %c0_23, %c0_24] : memref<1x16x128xf32, #tpu.memory_space<vmem>>, vector<1x16x128xf32>
    %58 = vector.shape_cast %57 : vector<1x16x128xf32> to vector<16x128xf32>
    %59 = vector.shape_cast %56 : vector<16x128xf32> to vector<1x16x128xf32>
    tpu.vector_store %arg5[%c0_22, %c0_23, %c0_24], %59 {strides = array<i32>} : memref<1x16x128xf32, #tpu.memory_space<vmem>>, vector<1x16x128xf32>,
    return
  }
  func.func @transform_0(%arg0: i32, %arg1: i32) -> (i32, i32) {
    %c0_i32 = arith.constant 0 : i32
    %c0_i32_0 = arith.constant 0 : i32
    %c0_i32_1 = arith.constant 0 : i32
    return %c0_i32, %c0_i32_0 : i32, i32
  }
  func.func @transform_1(%arg0: i32, %arg1: i32) -> (i32, i32) {
    %c0_i32 = arith.constant 0 : i32
    %c0_i32_0 = arith.constant 0 : i32
    %c0_i32_1 = arith.constant 0 : i32
    return %c0_i32, %c0_i32_0 : i32, i32
  }
  func.func @transform_2(%arg0: i32, %arg1: i32) -> (i32, i32, i32) {
    %c0_i32 = arith.constant 0 : i32
    %c0_i32_0 = arith.constant 0 : i32
    return %arg0, %c0_i32, %arg1 : i32, i32, i32
  }
  func.func @transform_3(%arg0: i32, %arg1: i32) -> (i32, i32, i32) {
    %c0_i32 = arith.constant 0 : i32
    %c0_i32_0 = arith.constant 0 : i32
    return %arg0, %c0_i32, %arg1 : i32, i32, i32
  }
}

</mosaic_0001>

<llo_original>
// kernel: tpu_custom_call.1
$region0: #{tpu_custom_call.1}
  #allocation0 [shape = 'u32[]', space=smem, size = 0x4, offset = 0x4, fixed_abs, tag = 'smem constant byte address 0x4 - core index']
  #allocation1 [shape = 'u32[144,128]{1,0:T(1,128)}', space=vmem, size = 0x12000, scoped, tag = 'internal scratch']
  %s0 = inlined_call_operand.hbm [shape: f32[16,16], index: 0, kind: input, shape index: {}]
  %s1 = inlined_call_operand.hbm [shape: f32[16,16], index: 1, kind: input, shape index: {}]
  %s2 = inlined_call_operand.hbm [shape: f32[2,16,128], index: 2, kind: input, shape index: {}]
  %s3 = inlined_call_operand.hbm [shape: f32[2,16,128], index: 3, kind: output, shape index: {}]
  %s4 = sld [smem:[#allocation0]]
  $region57: #{tpu_custom_call.1} parent=0
    _
  %s6 = ssub.s32 1, %s4
  %s7 = scalar_select 0, %s6, %s4
  $region1: #{tpu_custom_call.1} parent=0
    #allocation2 [shape = 'u8[8192]{0}', space=vmem, size = 0x2000, scoped, tag = 'input window, operand 0, single buffered']
    #allocation3 [shape = 's32[2]{0}', space=sflag, size = 0x8, scoped, tag = 'scoped memory for tpu_custom_call.1']
    #allocation4 [shape = 's32[2]{0}', space=sflag, size = 0x8, scoped, tag = 'scoped memory for tpu_custom_call.1']
    #allocation5 [shape = 'u8[8192]{0}', space=vmem, size = 0x2000, scoped, tag = 'input window, operand 1, single buffered']
    #allocation6 [shape = 's32[1]{0}', space=sflag, size = 0x4, scoped, tag = 'scoped memory for tpu_custom_call.1']
    #allocation7 [shape = 'u8[16384]{0}', space=vmem, size = 0x4000, scoped, tag = 'input window, operand 2']
    #allocation8 [shape = 'u8[16384]{0}', space=vmem, size = 0x4000, scoped, tag = 'output window, operand 0']
    %8 = vsyncpa [#allocation3], 0
    %9 = vsyncpa [#allocation6], 0
    %10 = vsyncpa [#allocation4], 0
    %s11 = scalar_lea.sflag [#allocation4], 1
    %12 = vsyncpa %s11, 0
    loop: start=0, step=1, limit=4
    $region2: #{tpu_custom_call.1} parent=1 // loop_pre_header
      _
    $region3: #{tpu_custom_call.1} parent=1 // loop_header
      %s14 = sphi 0, %s18
      %p15 = scmp.ge.s32.totalorder %s14, 4
      %s21 = sphi 0, %s33
      %s22 = sphi 0, %s29
      %s23 = sphi 0, %s21
      %s24 = sphi 0, %s22
      %s25 = sphi 0, %s23
      %s26 = sphi 0, %s24
      %s34 = sphi 0, %s34
      %s36 = sphi 0, %s34
      %s37 = sphi 0, %s36
      %s51 = sphi 0, %s37
      %s55 = sphi 0, %s55
      %s57 = sphi 0, %s55
      %s58 = sphi 0, %s57
      %s72 = sphi 0, %s58
      %s80 = sphi 0, %s82
      %s83 = sphi 0, %s80
      %s84 = sphi 0, %s83
      %s100 = sphi 0, %s84
      %s108 = sphi 0, %s110
      %s111 = sphi 0, %s108
      %s112 = sphi 0, %s111
      %s128 = sphi 0, %s112
    $region4: #{tpu_custom_call.1} parent=1 // loop_header_branch
      %17 = sbr.rel (%p15) target = $region8
    $region5: #{tpu_custom_call.1} parent=1 // loop_body
      %s19 = ssub.s32 %s14, 1
      %s20 = ssub.s32 %s14, 2
      %s27 = sadd.s32 1, %s22
      %p28 = scmp.ge.s32.totalorder %s27, 1
      %s29 = scalar_select %p28, 0, %s27
      %s30 = sadd.s32 1, %s21
      %s31 = scalar_select %p28, %s30, %s21
      %p32 = scmp.ge.s32.totalorder %s31, 2
      %s33 = scalar_select %p32, 0, %s31
      %s35 = sadd.s32 %s34, 1
      %p38 = scmp.eq.s32.totalorder %s14, 1
      %p39 = scmp.ne.s32.totalorder %s34, %s36
      %p40 = scmp.eq.s32.totalorder %s14, 0
      %p41 = por %p39, %p40
      %p42 = scmp.ne.s32.totalorder %s34, %s36
      %p43 = scmp.eq.s32.totalorder %s19, 1
      %p44 = por %p42, %p43
      %p45 = scmp.ne.s32.totalorder %s36, %s37
      %p46 = scmp.eq.s32.totalorder %s19, 0
      %p47 = por %p45, %p46
      %p48 = scmp.ne.s32.totalorder %s36, %s37
      %p49 = scmp.eq.s32.totalorder %s20, 1
      %p50 = por %p48, %p49
      %p52 = scmp.ne.s32.totalorder %s37, %s51
      %p53 = scmp.eq.s32.totalorder %s20, 0
      %p54 = por %p52, %p53
      %s56 = sadd.s32 %s55, 1
      %p59 = scmp.eq.s32.totalorder %s14, 1
      %p60 = scmp.ne.s32.totalorder %s55, %s57
      %p61 = scmp.eq.s32.totalorder %s14, 0
      %p62 = por %p60, %p61
      %p63 = scmp.ne.s32.totalorder %s55, %s57
      %p64 = scmp.eq.s32.totalorder %s19, 1
      %p65 = por %p63, %p64
      %p66 = scmp.ne.s32.totalorder %s57, %s58
      %p67 = scmp.eq.s32.totalorder %s19, 0
      %p68 = por %p66, %p67
      %p69 = scmp.ne.s32.totalorder %s57, %s58
      %p70 = scmp.eq.s32.totalorder %s20, 1
      %p71 = por %p69, %p70
      %p73 = scmp.ne.s32.totalorder %s58, %s72
      %p74 = scmp.eq.s32.totalorder %s20, 0
      %p75 = por %p73, %p74
      %s76 = ssub.s32 %s21, %s33
      %s77 = ssub.s32 %s22, %s29
      %s78 = sor.u32 %s76, %s77
      %p79 = scmp.eq.s32.totalorder %s78, 0
      %s81 = sadd.s32 %s80, 1
      %s82 = scalar_select %p79, %s80, %s81
      %p85 = pneg %p79
      %p86 = scmp.eq.s32.totalorder %s14, 1
      %p87 = por %p85, %p86
      %p88 = scmp.ne.s32.totalorder %s80, %s83
      %p89 = scmp.eq.s32.totalorder %s14, 0
      %p90 = por %p88, %p89
      %p91 = scmp.ne.s32.totalorder %s80, %s83
      %p92 = scmp.eq.s32.totalorder %s19, 1
      %p93 = por %p91, %p92
      %p94 = scmp.ne.s32.totalorder %s83, %s84
      %p95 = scmp.eq.s32.totalorder %s19, 0
      %p96 = por %p94, %p95
      %p97 = scmp.ne.s32.totalorder %s83, %s84
      %p98 = scmp.eq.s32.totalorder %s20, 1
      %p99 = por %p97, %p98
      %p101 = scmp.ne.s32.totalorder %s84, %s100
      %p102 = scmp.eq.s32.totalorder %s20, 0
      %p103 = por %p101, %p102
      %s104 = ssub.s32 %s21, %s33
      %s105 = ssub.s32 %s22, %s29
      %s106 = sor.u32 %s104, %s105
      %p107 = scmp.eq.s32.totalorder %s106, 0
      %s109 = sadd.s32 %s108, 1
      %s110 = scalar_select %p107, %s108, %s109
      %p113 = pneg %p107
      %p114 = scmp.eq.s32.totalorder %s14, 1
      %p115 = por %p113, %p114
      %p116 = scmp.ne.s32.totalorder %s108, %s111
      %p117 = scmp.eq.s32.totalorder %s14, 0
      %p118 = por %p116, %p117
      %p119 = scmp.ne.s32.totalorder %s108, %s111
      %p120 = scmp.eq.s32.totalorder %s19, 1
      %p121 = por %p119, %p120
      %p122 = scmp.ne.s32.totalorder %s111, %s112
      %p123 = scmp.eq.s32.totalorder %s19, 0
      %p124 = por %p122, %p123
      %p125 = scmp.ne.s32.totalorder %s111, %s112
      %p126 = scmp.eq.s32.totalorder %s20, 1
      %p127 = por %p125, %p126
      %p129 = scmp.ne.s32.totalorder %s112, %s128
      %p130 = scmp.eq.s32.totalorder %s20, 0
      %p131 = por %p129, %p130
      %p132 = scmp.le.s32.totalorder 1, %s14
      %p133 = scmp.lt.s32.totalorder %s14, 3
      %p134 = pnand %p132, %p133
      %p135 = pneg %p134
      // Predicated region
      $region9: #{tpu_custom_call.1} parent=5 // pred_check
        _
      $region10: #{tpu_custom_call.1} parent=5 // pred_check_branch
        %137 = sbr.rel (%p134) target = $region12
      $region11: #{tpu_custom_call.1} parent=5 // pred_region
        %s138 = ssub.s32 %s14, 1
        // Predicated region
        $region13: #{tpu_custom_call.1} parent=11 // pred_check
          %p139 = pneg %p47
        $region14: #{tpu_custom_call.1} parent=11 // pred_check_branch
          %141 = sbr.rel (%p139) target = $region16
        $region15: #{tpu_custom_call.1} parent=11 // pred_region
          %s143 = ssub.s32 256, 256
          %144 = vsyncadd [#allocation3], %s143
          %s145 = sshll.u32 [#allocation2], 4
          %s146 = int_to_ptr.vmem [resolvable:$true] %s145
          %151 = dma.hbm_to_vmem [thread:$0]  %s0, 256, %s146, [#allocation3], 128, 128, 8
        $region16: #{tpu_custom_call.1} parent=11 // pred_fallthru
          _
        // Predicated region
        $region17: #{tpu_custom_call.1} parent=11 // pred_check
          %p152 = pneg %p68
        $region18: #{tpu_custom_call.1} parent=11 // pred_check_branch
          %154 = sbr.rel (%p152) target = $region20
        $region19: #{tpu_custom_call.1} parent=11 // pred_region
          %s156 = ssub.s32 256, 256
          %157 = vsyncadd [#allocation6], %s156
          %s158 = sshll.u32 [#allocation5], 4
          %s159 = int_to_ptr.vmem [resolvable:$true] %s158
          %164 = dma.hbm_to_vmem [thread:$0]  %s1, 256, %s159, [#allocation6], 128, 128, 8
        $region20: #{tpu_custom_call.1} parent=11 // pred_fallthru
          _
      $region12: #{tpu_custom_call.1} parent=5 // pred_fallthru
        _
      %p165 = scmp.lt.s32.totalorder %s14, 2
      // Predicated region
      $region21: #{tpu_custom_call.1} parent=5 // pred_check
        %p166 = pneg %p165
      $region22: #{tpu_custom_call.1} parent=5 // pred_check_branch
        %168 = sbr.rel (%p166) target = $region24
      $region23: #{tpu_custom_call.1} parent=5 // pred_region
        // Predicated region
        $region25: #{tpu_custom_call.1} parent=23 // pred_check
          %p169 = pneg %p90
        $region26: #{tpu_custom_call.1} parent=23 // pred_check_branch
          %171 = sbr.rel (%p169) target = $region28
        $region27: #{tpu_custom_call.1} parent=23 // pred_region
          %s172 = sand.u32 %s14, 1
          %s173 = scalar_lea.sflag [#allocation3], %s172
          %s174 = sand.u32 %s80, 1
          %s175 = smul.addr %s174, 16
          %s176 = scalar_lea.vmem [#allocation7], %s175
          %s178 = ssub.s32 256, 256
          %179 = vsyncadd %s173, %s178
          %s180 = smul.addr %s21, 2
          %s181 = sadd.s32 %s22, %s180
          %s182 = smul.addr %s181, 128
          %s183 = scalar_lea.hbm %s2, %s182
          %s184 = sshll.u32 %s176, 4
          %s185 = int_to_ptr.vmem [resolvable:$true] %s184
          %190 = dma.hbm_to_vmem [thread:$0]  %s183, 256, %s185, %s173, 128, 128, 8
        $region28: #{tpu_custom_call.1} parent=23 // pred_fallthru
          _
      $region24: #{tpu_custom_call.1} parent=5 // pred_fallthru
        _
      %p191 = scmp.le.s32.totalorder 1, %s14
      %p192 = scmp.lt.s32.totalorder %s14, 3
      %p193 = pnand %p191, %p192
      %p194 = pneg %p193
      // Predicated region
      $region29: #{tpu_custom_call.1} parent=5 // pred_check
        _
      $region30: #{tpu_custom_call.1} parent=5 // pred_check_branch
        %196 = sbr.rel (%p193) target = $region32
      $region31: #{tpu_custom_call.1} parent=5 // pred_region
        %s197 = ssub.s32 %s14, 1
        // Predicated region
        $region33: #{tpu_custom_call.1} parent=31 // pred_check
          %p198 = pneg %p47
        $region34: #{tpu_custom_call.1} parent=31 // pred_check_branch
          %200 = sbr.rel (%p198) target = $region36
        $region35: #{tpu_custom_call.1} parent=31 // pred_region
          %201 = dma.done [#allocation3], 256
        $region36: #{tpu_custom_call.1} parent=31 // pred_fallthru
          _
        // Predicated region
        $region37: #{tpu_custom_call.1} parent=31 // pred_check
          %p202 = pneg %p68
        $region38: #{tpu_custom_call.1} parent=31 // pred_check_branch
          %204 = sbr.rel (%p202) target = $region40
        $region39: #{tpu_custom_call.1} parent=31 // pred_region
          %205 = dma.done [#allocation6], 256
        $region40: #{tpu_custom_call.1} parent=31 // pred_fallthru
          _
        %s206 = sand.u32 %s19, 1
        %s207 = scalar_lea.sflag [#allocation3], %s206
        %s208 = sand.u32 %s83, 1
        %s209 = smul.addr %s208, 16
        %s210 = scalar_lea.vmem [#allocation7], %s209
        // Predicated region
        $region41: #{tpu_custom_call.1} parent=31 // pred_check
          %p211 = pneg %p96
        $region42: #{tpu_custom_call.1} parent=31 // pred_check_branch
          %213 = sbr.rel (%p211) target = $region44
        $region43: #{tpu_custom_call.1} parent=31 // pred_region
          %214 = dma.done %s207, 256
        $region44: #{tpu_custom_call.1} parent=31 // pred_fallthru
          _
        %p215 = pneg %p47
        %p216 = pneg %p44
        %p217 = pneg %p68
        %p218 = pneg %p65
        %s219 = sand.u32 %s19, 1
        %s220 = scalar_lea.sflag [#allocation3], %s219
        %s221 = sand.u32 %s83, 1
        %s222 = smul.addr %s221, 16
        %s223 = scalar_lea.vmem [#allocation7], %s222
        %p224 = pneg %p96
        %p225 = pneg %p93
        %p226 = pneg %p124
        %p227 = pneg %p121
        %s228 = sand.u32 %s111, 1
        %s229 = scalar_lea.sflag [#allocation4], %s228
        %s230 = sand.u32 %s111, 1
        %s231 = smul.addr %s230, 16
        %s232 = scalar_lea.vmem [#allocation8], %s231
        %v233 = vld [vmem:[%s210] sm:$0xff]
        %v234 = vld [vmem:[%s210 + $0x8] sm:$0xff]
        %v235 = vld [vmem:[#allocation2] sm:$0xff]
        %v236 = vld [vmem:[#allocation2 + $0x8] sm:$0xff]
        %vm237 = vcmask 130048
        %v239 = vsel %vm237, %v235, 0
        %v242 = vsel %vm237, %v236, 0
        %244 = vmatprep.subr.mxu0 0.0
        %245 = vmatpush1.msra.mxu0 %v233
        %246 = vmatprep.subr.mxu0 0.0
        %247 = vmatpush1.msra.mxu0 %v234
        %248 = vmatprep.subr.mxu0 0.0
        %249 = vmatpush1.msra.mxu0 0.0
        %250 = vmatprep.subr.mxu0 0.0
        %251 = vmatpush1.msra.mxu0 0.0
        %252 = vmatprep.subr.mxu0 0.0
        %253 = vmatpush1.msra.mxu0 0.0
        %254 = vmatprep.subr.mxu0 0.0
        %255 = vmatpush1.msra.mxu0 0.0
        %256 = vmatprep.subr.mxu0 0.0
        %257 = vmatpush1.msra.mxu0 0.0
        %258 = vmatprep.subr.mxu0 0.0
        %259 = vmatpush1.msra.mxu0 0.0
        %260 = vmatprep.subr.mxu0 0.0
        %261 = vmatpush1.msra.mxu0 0.0
        %262 = vmatprep.subr.mxu0 0.0
        %263 = vmatpush1.msra.mxu0 0.0
        %264 = vmatprep.subr.mxu0 0.0
        %265 = vmatpush1.msra.mxu0 0.0
        %266 = vmatprep.subr.mxu0 0.0
        %267 = vmatpush1.msra.mxu0 0.0
        %268 = vmatprep.subr.mxu0 0.0
        %269 = vmatpush1.msra.mxu0 0.0
        %270 = vmatprep.subr.mxu0 0.0
        %271 = vmatpush1.msra.mxu0 0.0
        %272 = vmatprep.subr.mxu0 0.0
        %273 = vmatpush1.msra.mxu0 0.0
        %274 = vmatprep.subr.mxu0 0.0
        %275 = vmatpush1.msra.mxu0 0.0
        %276 = vmatprep.subr.mxu0 0.0
        %277 = vmatpush1.msra.mxu0 0.0
        %278 = vmatprep.subr.mxu0 0.0
        %279 = vmatpush1.msra.mxu0 0.0
        %280 = vmatprep.subr.mxu0 0.0
        %281 = vmatpush1.msra.mxu0 0.0
        %282 = vmatprep.subr.mxu0 0.0
        %283 = vmatpush1.msra.mxu0 0.0
        %284 = vmatprep.subr.mxu0 0.0
        %285 = vmatpush1.msra.mxu0 0.0
        %286 = vmatprep.subr.mxu0 0.0
        %287 = vmatpush1.msra.mxu0 0.0
        %288 = vmatprep.subr.mxu0 0.0
        %289 = vmatpush1.msra.mxu0 0.0
        %290 = vmatprep.subr.mxu0 0.0
        %291 = vmatpush1.msra.mxu0 0.0
        %292 = vmatprep.subr.mxu0 0.0
        %293 = vmatpush1.msra.mxu0 0.0
        %294 = vmatprep.subr.mxu0 0.0
        %295 = vmatpush1.msra.mxu0 0.0
        %296 = vmatprep.subr.mxu0 0.0
        %297 = vmatpush1.msra.mxu0 0.0
        %298 = vmatprep.subr.mxu0 0.0
        %299 = vmatpush1.msra.mxu0 0.0
        %300 = vmatprep.subr.mxu0 0.0
        %301 = vmatpush1.msra.mxu0 0.0
        %302 = vmatprep.subr.mxu0 0.0
        %303 = vmatpush1.msra.mxu0 0.0
        %304 = vmatprep.subr.mxu0 0.0
        %305 = vmatpush1.msra.mxu0 0.0
        %306 = vmatprep.subr.mxu0 0.0
        %307 = vmatpush1.msra.mxu0 0.0
        %308 = vmatprep.mubr.f32.mxu0 0.0
        %309 = vmatmul.mubr.f32.gmra.mrb[0].mxu0 %v239
        %v310 = vpop.f32.mrb[0].mxu0
        %v311 = vadd.f32 0.0, %v310
        %v312 = vpop.f32.mrb[0].mxu0
        %313 = vmatprep.mubr.f32.mxu0 0.0
        %314 = vmatmul.mubr.f32.gmra.mrb[0].mxu0 %v242
        %v315 = vpop.f32.mrb[0].mxu0
        %v316 = vadd.f32 0.0, %v315
        %v317 = vpop.f32.mrb[0].mxu0
        %318 = vdwg.mxu0
        %v319 = vmul.f32 %v311, %v311
        %v320 = vmul.f32 %v316, %v316
        %v321 = vadd.f32 %v319, %v320
        %v322 = vlaneseq
        %v323 = vshrl.u32 %v322, 7
        %v324 = vcvt.s32.f32 %v323
        %v325 = vrot.slane %v321, 4
        %v326 = vmax.f32 %v321, %v325
        %v327 = vrot.slane %v326, 2
        %v328 = vmax.f32 %v326, %v327
        %v329 = vrot.slane %v328, 1
        %v330 = vmax.f32 %v328, %v329
        %vm331 = vcmp.eq.f32.partialorder %v321, %v330
        %v332 = vsel %vm331, %v324, 8.0
        %v333 = vrot.slane %v332, 4
        %v334 = vmin.f32 %v332, %v333
        %v335 = vrot.slane %v334, 2
        %v336 = vmin.f32 %v334, %v335
        %v337 = vrot.slane %v336, 1
        %v338 = vmin.f32 %v336, %v337
        %vm339 = vcmp.eq.f32.partialorder %v324, %v338
        %v340 = vsel %vm339, 1.0, 0.0
        %v341 = vsel %vm339, -1.0, %v321
        %v342 = vrot.slane %v341, 4
        %v343 = vmax.f32 %v341, %v342
        %v344 = vrot.slane %v343, 2
        %v345 = vmax.f32 %v343, %v344
        %v346 = vrot.slane %v345, 1
        %v347 = vmax.f32 %v345, %v346
        %vm348 = vcmp.eq.f32.partialorder %v341, %v347
        %v349 = vsel %vm348, %v324, 8.0
        %v350 = vrot.slane %v349, 4
        %v351 = vmin.f32 %v349, %v350
        %v352 = vrot.slane %v351, 2
        %v353 = vmin.f32 %v351, %v352
        %v354 = vrot.slane %v353, 1
        %v355 = vmin.f32 %v353, %v354
        %vm356 = vcmp.eq.f32.partialorder %v324, %v355
        %v357 = vsel %vm356, 1.0, %v340
        %v358 = vsel %vm356, -1.0, %v341
        %v359 = vrot.slane %v358, 4
        %v360 = vmax.f32 %v358, %v359
        %v361 = vrot.slane %v360, 2
        %v362 = vmax.f32 %v360, %v361
        %v363 = vrot.slane %v362, 1
        %v364 = vmax.f32 %v362, %v363
        %vm365 = vcmp.eq.f32.partialorder %v358, %v364
        %v366 = vsel %vm365, %v324, 8.0
        %v367 = vrot.slane %v366, 4
        %v368 = vmin.f32 %v366, %v367
        %v369 = vrot.slane %v368, 2
        %v370 = vmin.f32 %v368, %v369
        %v371 = vrot.slane %v370, 1
        %v372 = vmin.f32 %v370, %v371
        %vm373 = vcmp.eq.f32.partialorder %v324, %v372
        %v374 = vsel %vm373, 1.0, %v357
        %v375 = vmul.f32 %v311, %v374
        %v376 = vmul.f32 %v316, %v374
        %v377 = vld [vmem:[#allocation5] sm:$0xff]
        %v378 = vld [vmem:[#allocation5 + $0x8] sm:$0xff]
        %v380 = vsel %vm237, %v377, 0
        %v383 = vsel %vm237, %v378, 0
        %385 = vmatprep.subr.mxu0 0.0
        %386 = vmatpush1.msra.mxu0 %v375
        %387 = vmatprep.subr.mxu0 0.0
        %388 = vmatpush1.msra.mxu0 %v376
        %389 = vmatprep.subr.mxu0 0.0
        %390 = vmatpush1.msra.mxu0 0.0
        %391 = vmatprep.subr.mxu0 0.0
        %392 = vmatpush1.msra.mxu0 0.0
        %393 = vmatprep.subr.mxu0 0.0
        %394 = vmatpush1.msra.mxu0 0.0
        %395 = vmatprep.subr.mxu0 0.0
        %396 = vmatpush1.msra.mxu0 0.0
        %397 = vmatprep.subr.mxu0 0.0
        %398 = vmatpush1.msra.mxu0 0.0
        %399 = vmatprep.subr.mxu0 0.0
        %400 = vmatpush1.msra.mxu0 0.0
        %401 = vmatprep.subr.mxu0 0.0
        %402 = vmatpush1.msra.mxu0 0.0
        %403 = vmatprep.subr.mxu0 0.0
        %404 = vmatpush1.msra.mxu0 0.0
        %405 = vmatprep.subr.mxu0 0.0
        %406 = vmatpush1.msra.mxu0 0.0
        %407 = vmatprep.subr.mxu0 0.0
        %408 = vmatpush1.msra.mxu0 0.0
        %409 = vmatprep.subr.mxu0 0.0
        %410 = vmatpush1.msra.mxu0 0.0
        %411 = vmatprep.subr.mxu0 0.0
        %412 = vmatpush1.msra.mxu0 0.0
        %413 = vmatprep.subr.mxu0 0.0
        %414 = vmatpush1.msra.mxu0 0.0
        %415 = vmatprep.subr.mxu0 0.0
        %416 = vmatpush1.msra.mxu0 0.0
        %417 = vmatprep.subr.mxu0 0.0
        %418 = vmatpush1.msra.mxu0 0.0
        %419 = vmatprep.subr.mxu0 0.0
        %420 = vmatpush1.msra.mxu0 0.0
        %421 = vmatprep.subr.mxu0 0.0
        %422 = vmatpush1.msra.mxu0 0.0
        %423 = vmatprep.subr.mxu0 0.0
        %424 = vmatpush1.msra.mxu0 0.0
        %425 = vmatprep.subr.mxu0 0.0
        %426 = vmatpush1.msra.mxu0 0.0
        %427 = vmatprep.subr.mxu0 0.0
        %428 = vmatpush1.msra.mxu0 0.0
        %429 = vmatprep.subr.mxu0 0.0
        %430 = vmatpush1.msra.mxu0 0.0
        %431 = vmatprep.subr.mxu0 0.0
        %432 = vmatpush1.msra.mxu0 0.0
        %433 = vmatprep.subr.mxu0 0.0
        %434 = vmatpush1.msra.mxu0 0.0
        %435 = vmatprep.subr.mxu0 0.0
        %436 = vmatpush1.msra.mxu0 0.0
        %437 = vmatprep.subr.mxu0 0.0
        %438 = vmatpush1.msra.mxu0 0.0
        %439 = vmatprep.subr.mxu0 0.0
        %440 = vmatpush1.msra.mxu0 0.0
        %441 = vmatprep.subr.mxu0 0.0
        %442 = vmatpush1.msra.mxu0 0.0
        %443 = vmatprep.subr.mxu0 0.0
        %444 = vmatpush1.msra.mxu0 0.0
        %445 = vmatprep.subr.mxu0 0.0
        %446 = vmatpush1.msra.mxu0 0.0
        %447 = vmatprep.subr.mxu0 0.0
        %448 = vmatpush1.msra.mxu0 0.0
        %449 = vmatprep.mubr.f32.mxu0 0.0
        %450 = vmatmul.mubr.f32.gmra.mrb[0].mxu0 %v380
        %v451 = vpop.f32.mrb[0].mxu0
        %v452 = vadd.f32 0.0, %v451
        %v453 = vpop.f32.mrb[0].mxu0
        %454 = vmatprep.mubr.f32.mxu0 0.0
        %455 = vmatmul.mubr.f32.gmra.mrb[0].mxu0 %v383
        %v456 = vpop.f32.mrb[0].mxu0
        %v457 = vadd.f32 0.0, %v456
        %v458 = vpop.f32.mrb[0].mxu0
        %459 = vdwg.mxu0
        %460 = vst [vmem:[%s232] sm:$0xff] %v452
        %461 = vst [vmem:[%s232 + $0x8] sm:$0xff] %v457
        %s462 = sand.u32 %s111, 1
        %s463 = scalar_lea.sflag [#allocation4], %s462
        %s464 = sand.u32 %s111, 1
        %s465 = smul.addr %s464, 16
        %s466 = scalar_lea.vmem [#allocation8], %s465
        // Predicated region
        $region45: #{tpu_custom_call.1} parent=31 // pred_check
          %p467 = pneg %p121
        $region46: #{tpu_custom_call.1} parent=31 // pred_check_branch
          %469 = sbr.rel (%p467) target = $region48
        $region47: #{tpu_custom_call.1} parent=31 // pred_region
          %s471 = ssub.s32 256, 256
          %472 = vsyncadd %s463, %s471
          %s473 = smul.addr %s23, 2
          %s474 = sadd.s32 %s24, %s473
          %s475 = smul.addr %s474, 128
          %s476 = scalar_lea.hbm %s3, %s475
          %s477 = sshll.u32 %s466, 4
          %s478 = int_to_ptr.vmem [resolvable:$true] %s477
          %483 = dma.vmem_to_hbm [thread:$0]  %s478, 256, %s476, %s463, 128, 128, 8
        $region48: #{tpu_custom_call.1} parent=31 // pred_fallthru
          _
      $region32: #{tpu_custom_call.1} parent=5 // pred_fallthru
        _
      %p484 = scmp.le.s32.totalorder 2, %s14
      // Predicated region
      $region49: #{tpu_custom_call.1} parent=5 // pred_check
        %p485 = pneg %p484
      $region50: #{tpu_custom_call.1} parent=5 // pred_check_branch
        %487 = sbr.rel (%p485) target = $region52
      $region51: #{tpu_custom_call.1} parent=5 // pred_region
        %s488 = ssub.s32 %s14, 2
        // Predicated region
        $region53: #{tpu_custom_call.1} parent=51 // pred_check
          %p489 = pneg %p127
        $region54: #{tpu_custom_call.1} parent=51 // pred_check_branch
          %491 = sbr.rel (%p489) target = $region56
        $region55: #{tpu_custom_call.1} parent=51 // pred_region
          %s492 = sand.u32 %s112, 1
          %s493 = scalar_lea.sflag [#allocation4], %s492
          %s494 = sand.u32 %s112, 1
          %s495 = smul.addr %s494, 16
          %s496 = scalar_lea.vmem [#allocation8], %s495
          %497 = dma.done %s493, 256
        $region56: #{tpu_custom_call.1} parent=51 // pred_fallthru
          _
      $region52: #{tpu_custom_call.1} parent=5 // pred_fallthru
        _
    $region6: #{tpu_custom_call.1} parent=1 // loop_footer
      %s18 = sadd.s32 1, %s14
    $region7: #{tpu_custom_call.1} parent=1 // loop_footer_branch
      %13 = sbr.rel target = $region3
    $region8: #{tpu_custom_call.1} parent=1 // loop_exit
      _
    %498 = vsyncpa [#allocation3], 1
    %s499 = scalar_lea.sflag [#allocation3], 1
    %500 = vsyncpa %s499, 1
    %501 = vsyncpa [#allocation6], 1
    %502 = vsyncpa [#allocation4], 1
    %s503 = scalar_lea.sflag [#allocation4], 1
    %504 = vsyncpa %s503, 1

</llo_original>
